<compile_context>
chip_gen: v6e
topology: v6e:2x2x1
jax: 0.10.0
libtpu: 0.0.40
codegen_flags: <defaults>
</compile_context>

<pallas_src>
import functools

import jax
import jax.numpy as jnp
import numpy as np
from jax import lax
from jax.experimental import pallas as pl
from jax.experimental.pallas import tpu as pltpu


# ----------------------------- linear kernel ------------------------------ #
def linear_kernel(x_ref, w_ref, b_ref, o_ref):
    o_ref[...] = (
        jnp.dot(x_ref[...], w_ref[...], preferred_element_type=jnp.float32)
        + b_ref[...]
    )


def _row_tile(m, target=512):
    """Largest legal row tile (<= target) for a (m, K) operand: multiple of 8
    dividing m, or the full m (full-dim blocks are always legal)."""
    if m <= target:
        return m
    t = (min(target, m) // 8) * 8
    while t >= 8:
        if m % t == 0:
            return t
        t -= 8
    return m  # fallback: single full-size block


def linear(x, w, b, *, tm=512, mxu_dtype=jnp.float32):
    """y = x @ w + b.  x: (M, K), w: (K, Nout), b: (Nout,).  Output f32."""
    M, K = x.shape
    _, Nout = w.shape
    tm = _row_tile(M, tm)
    if mxu_dtype != jnp.float32:
        x = x.astype(mxu_dtype)
        w = w.astype(mxu_dtype)
    return pl.pallas_call(
        linear_kernel,
        out_shape=jax.ShapeDtypeStruct((M, Nout), jnp.float32),
        grid=(M // tm,),
        in_specs=[
            pl.BlockSpec((tm, K), lambda i: (i, 0)),
            # weight / bias block index is constant -> stays VMEM-resident
            pl.BlockSpec((K, Nout), lambda i: (0, 0)),
            pl.BlockSpec((1, Nout), lambda i: (0, 0)),
        ],
        out_specs=pl.BlockSpec((tm, Nout), lambda i: (i, 0)),
        compiler_params=pltpu.CompilerParams(dimension_semantics=("parallel",)),
    )(x, w, b.reshape(1, Nout))


# ---------------------------- attention kernel ----------------------------- #
def attention_kernel(qkv_ref, r_ref, e_ref, o_ref, *, scale, num_heads, head_dim):
    """One batch element per grid step.

    qkv_ref: (TN, 3C)  packed q|k|v, each C = num_heads*head_dim wide
    r_ref:   (H, T, TN) rel-pos bias, already repeated N times along columns
    e_ref:   (TN, T)    one-hot row-expansion matrix (E[p, t] = 1 iff p//N == t)
    o_ref:   (TN, C)    lane-dense output block (all heads)
    """
    C = num_heads * head_dim
    e = e_ref[...]  # (TN, T), small; hoisted out of the head loop

    for h in range(num_heads):
        # head slices straight out of the packed VMEM block (static offsets)
        qh = qkv_ref[:, pl.ds(h * head_dim, head_dim)] * scale        # scale folded into q
        kh = qkv_ref[:, pl.ds(C + h * head_dim, head_dim)]
        vh = qkv_ref[:, pl.ds(2 * C + h * head_dim, head_dim)]

        # relative-position bias expanded in-VMEM via one-hot matmul:
        # bias[p, q] = table[(p//N) - (q//N) + T - 1, h]
        bias = jnp.dot(e, r_ref[h], preferred_element_type=jnp.float32)  # (TN, TN)

        # scores = (q*scale) @ k^T + bias   (f32 accumulation on the MXU)
        s = lax.dot_general(
            qh, kh, dimension_numbers=(((1,), (1,)), ((), ())),
            preferred_element_type=jnp.float32,
        ) + bias

        # softmax along last dim (f32 VPU/EUP math)
        m = jnp.max(s, axis=-1, keepdims=True)
        p = jnp.exp(s - m)
        denom = jnp.sum(p, axis=-1, keepdims=True)
        inv = pl.reciprocal(denom, approx=True)      # EUP slot
        inv = inv * (2.0 - denom * inv)              # one Newton step -> f32 accurate

        out_h = jnp.dot(p.astype(vh.dtype), vh,
                        preferred_element_type=jnp.float32) * inv      # (TN, hd)

        # write into the lane-dense (TN, C) output block; the HBM write-back is
        # one contiguous (TN, C) DMA per grid step.
        o_ref[:, pl.ds(h * head_dim, head_dim)] = out_h.astype(o_ref.dtype)


def attention(qkv, rel_r, expand, scale, num_heads, head_dim):
    """qkv: (B, TN, 3C); rel_r: (H, T, TN); expand: (TN, T) -> out (B, TN, C) f32."""
    B, TN, threeC = qkv.shape
    C = num_heads * head_dim
    assert threeC == 3 * C
    H, T, _ = rel_r.shape

    kern = functools.partial(
        attention_kernel, scale=scale, num_heads=num_heads, head_dim=head_dim
    )
    return pl.pallas_call(
        kern,
        out_shape=jax.ShapeDtypeStruct((B, TN, C), jnp.float32),
        grid=(B,),
        in_specs=[
            pl.BlockSpec((None, TN, 3 * C), lambda b: (b, 0, 0)),
            # bias table + expansion matrix: constant block index -> VMEM resident
            pl.BlockSpec((H, T, TN), lambda b: (0, 0, 0)),
            pl.BlockSpec((TN, T), lambda b: (0, 0)),
        ],
        out_specs=pl.BlockSpec((None, TN, C), lambda b: (b, 0, 0)),
        compiler_params=pltpu.CompilerParams(dimension_semantics=("parallel",)),
    )(qkv, rel_r, expand)


# ------------------------------- full module ------------------------------- #
def video_attention(x, params, num_heads, seq_len, mxu_dtype=jnp.float32):
    """x: (B*T, N, C) -> (B*T, N, C).  Set mxu_dtype=jnp.bfloat16 on v6e/v7x for
    ~2x MXU throughput / half DMA bytes (softmax + accumulation stay f32)."""
    BT, N, C = x.shape
    T = seq_len
    B = BT // T
    assert BT == B * T
    H = num_heads
    hd = C // H
    scale = hd ** (-0.5)
    TN = T * N

    # (b t) n c -> b (t n) c  (pure reshape, no copy)
    xf = x.reshape(B, TN, C).reshape(B * TN, C)

    # qkv projection (Pallas matmul), kept packed as (B, TN, 3C) -- no transposes
    qkv = linear(xf, params["w_qkv"], params["b_qkv"], mxu_dtype=mxu_dtype)
    qkv = qkv.reshape(B, TN, 3 * C)

    # tiny relative-position bias helpers (never materialize (H, TN, TN) in HBM):
    #   rel_r[h, t, q] = table[t - q//N + T - 1, h]   (columns pre-repeated by N)
    #   expand[p, t]   = 1.0 iff p//N == t            (one-hot row expansion)
    coords = jnp.arange(T)
    rel_idx = coords[:, None] - coords[None, :] + T - 1                  # (T, T)
    bias_tt = params["rel_pos_table"][rel_idx]                           # (T, T, H)
    rel_r = jnp.transpose(jnp.repeat(bias_tt, N, axis=1), (2, 0, 1))     # (H, T, TN)
    expand = (jnp.arange(TN)[:, None] // N == jnp.arange(T)[None, :]).astype(
        jnp.float32
    )                                                                    # (TN, T)

    if mxu_dtype != jnp.float32:
        qkv = qkv.astype(mxu_dtype)

    # attention (Pallas kernel, per batch element, all heads, lane-dense output)
    out = attention(qkv, rel_r, expand, scale, H, hd)                    # (B, TN, C)

    # output projection (Pallas matmul)
    out = linear(out.reshape(B * TN, C), params["w_proj"], params["b_proj"],
                 mxu_dtype=mxu_dtype)                                    # (B*TN, C)

    # b (t n) c -> (b t) n c  (pure reshape)
    return out.reshape(BT, N, C)


# --------------------------- pure-JAX reference ---------------------------- #
def reference_forward(x, params, num_heads, seq_len):
    BT, N, C = x.shape
    T = seq_len
    B = BT // T
    H = num_heads
    hd = C // H
    scale = hd ** (-0.5)

    x2 = x.reshape(B, T * N, C)
    qkv = x2 @ params["w_qkv"] + params["b_qkv"]
    qkv = jnp.transpose(qkv.reshape(B, T * N, 3, H, hd), (2, 0, 3, 1, 4))
    q, k, v = qkv[0], qkv[1], qkv[2]
    attn = jnp.einsum("bhid,bhjd->bhij", q, k) * scale

    coords = jnp.arange(T)
    rel_idx = coords[:, None] - coords[None, :] + T - 1
    bias = params["rel_pos_table"][rel_idx]                    # (T, T, H)
    bias = jnp.repeat(jnp.repeat(bias, N, axis=0), N, axis=1)  # (TN, TN, H)
    bias = jnp.transpose(bias, (2, 0, 1))[None]                # (1, H, TN, TN)
    attn = jax.nn.softmax(attn + bias, axis=-1)

    out = jnp.einsum("bhij,bhjd->bhid", attn, v)
    out = jnp.transpose(out, (0, 2, 1, 3)).reshape(B, T * N, C)
    out = out @ params["w_proj"] + params["b_proj"]
    return out.reshape(BT, N, C)


# ----------------------------------- main ----------------------------------- #
if __name__ == "__main__":
    B, T, N, C, H = 2, 4, 16, 64, 4      # BT=8, T*N=64, head_dim=16
    key = jax.random.PRNGKey(0)
    k1, k2, k3, k4, k5 = jax.random.split(key, 5)

    x = jax.random.normal(k1, (B * T, N, C), dtype=jnp.float32)
    params = {
        # nn.Linear(dim, 3*dim, bias=False): weight stored pre-transposed (C, 3C)
        "w_qkv": 0.1 * jax.random.normal(k2, (C, 3 * C), dtype=jnp.float32),
        "b_qkv": jnp.zeros((3 * C,), dtype=jnp.float32),  # qkv_bias=False
        # nn.Linear(dim, dim): pre-transposed (C, C) + bias
        "w_proj": 0.1 * jax.random.normal(k3, (C, C), dtype=jnp.float32),
        "b_proj": 0.1 * jax.random.normal(k4, (C,), dtype=jnp.float32),
        # relative_position_bias_table (2T-1, H)
        "rel_pos_table": 0.1 * jax.random.normal(k5, (2 * T - 1, H), dtype=jnp.float32),
    }

    ref = reference_forward(x, params, num_heads=H, seq_len=T)

    # f32 MXU path (bit-faithful to the PyTorch module)
    out = video_attention(x, params, num_heads=H, seq_len=T)
    out = jax.block_until_ready(out)
    assert out.shape == (B * T, N, C)
    assert np.allclose(np.asarray(out), np.asarray(ref), rtol=1e-4, atol=1e-4)

    # bf16 MXU-input path (recommended on v6e/v7x); softmax/accum stay f32.
    out_bf16 = video_attention(x, params, num_heads=H, seq_len=T,
                               mxu_dtype=jnp.bfloat16)
    out_bf16 = jax.block_until_ready(out_bf16)
    assert np.allclose(np.asarray(out_bf16), np.asarray(ref), rtol=3e-2, atol=3e-2)

    print("KERNEL_OK")
</pallas_src>

<mosaic_0001>
module attributes {stable_mosaic.version = 11 : i64} {
  func.func @linear_kernel(%arg0: i32, %arg1: memref<128x64xf32, #tpu.memory_space<vmem>>, %arg2: memref<64x192xf32, #tpu.memory_space<vmem>>, %arg3: memref<1x192xf32, #tpu.memory_space<vmem>>, %arg4: memref<128x192xf32, #tpu.memory_space<vmem>>) attributes {dimension_semantics = [#tpu.dimension_semantics<parallel>], iteration_bounds = array<i64: 1>, scalar_prefetch = 0 : i64, scratch_operands = 0 : i64, tpu.core_type = #tpu.core_type<tc>, window_params = [{transform_indices = @transform_0, window_bounds = array<i64: 128, 64>}, {pipeline_mode = #tpu.pipeline_mode<synchronous>, transform_indices = @transform_1, window_bounds = array<i64: 64, 192>}, {pipeline_mode = #tpu.pipeline_mode<synchronous>, transform_indices = @transform_2, window_bounds = array<i64: 1, 192>}, {transform_indices = @transform_3, window_bounds = array<i64: 128, 192>}]} {
    %c0 = arith.constant 0 : index
    %c0_0 = arith.constant 0 : index
    %0 = vector.load %arg1[%c0, %c0_0] : memref<128x64xf32, #tpu.memory_space<vmem>>, vector<128x64xf32>
    %c0_1 = arith.constant 0 : index
    %c0_2 = arith.constant 0 : index
    %1 = vector.load %arg2[%c0_1, %c0_2] : memref<64x192xf32, #tpu.memory_space<vmem>>, vector<64x192xf32>
    %cst = arith.constant dense<0.000000e+00> : vector<128x192xf32>
    %2 = tpu.matmul %0, %1, %cst {dimension_numbers = #tpu.dot_dimension_numbers<[1], [0], [0], [1], [0, 0, 1, 1], [], []>} : vector<128x64xf32>, vector<64x192xf32>, vector<128x192xf32> -> vector<128x192xf32>
    %c0_3 = arith.constant 0 : index
    %c0_4 = arith.constant 0 : index
    %3 = vector.load %arg3[%c0_3, %c0_4] : memref<1x192xf32, #tpu.memory_space<vmem>>, vector<1x192xf32>
    %4 = vector.broadcast %3 : vector<1x192xf32> to vector<128x192xf32>
    %5 = arith.addf %2, %4 : vector<128x192xf32>
    %c0_5 = arith.constant 0 : index
    %c0_6 = arith.constant 0 : index
    %6 = vector.load %arg4[%c0_5, %c0_6] : memref<128x192xf32, #tpu.memory_space<vmem>>, vector<128x192xf32>
    tpu.vector_store %arg4[%c0_5, %c0_6], %5 {strides = array<i32>} : memref<128x192xf32, #tpu.memory_space<vmem>>, vector<128x192xf32>,
    return
  }
  func.func @transform_0(%arg0: i32) -> (i32, i32) {
    %c0_i32 = arith.constant 0 : i32
    %c0_i32_0 = arith.constant 0 : i32
    return %arg0, %c0_i32 : i32, i32
  }
  func.func @transform_1(%arg0: i32) -> (i32, i32) {
    %c0_i32 = arith.constant 0 : i32
    %c0_i32_0 = arith.constant 0 : i32
    %c0_i32_1 = arith.constant 0 : i32
    return %c0_i32, %c0_i32_0 : i32, i32
  }
  func.func @transform_2(%arg0: i32) -> (i32, i32) {
    %c0_i32 = arith.constant 0 : i32
    %c0_i32_0 = arith.constant 0 : i32
    %c0_i32_1 = arith.constant 0 : i32
    return %c0_i32, %c0_i32_0 : i32, i32
  }
  func.func @transform_3(%arg0: i32) -> (i32, i32) {
    %c0_i32 = arith.constant 0 : i32
    %c0_i32_0 = arith.constant 0 : i32
    return %arg0, %c0_i32 : i32, i32
  }
}

</mosaic_0001>

<llo_original>
// kernel: tpu_custom_call.1
$region0: #{tpu_custom_call.1}
  #allocation0 [shape = 'u32[]', space=smem, size = 0x4, offset = 0x4, fixed_abs, tag = 'smem constant byte address 0x4 - core index']
  #allocation1 [shape = 'u32[144,128]{1,0:T(1,128)}', space=vmem, size = 0x12000, scoped, tag = 'internal scratch']
  %s0 = inlined_call_operand.vmem [shape: f32[128,64], index: 0, kind: input, shape index: {}]
  %s1 = inlined_call_operand.vmem [shape: f32[64,192], index: 1, kind: input, shape index: {}]
  %s2 = inlined_call_operand.vmem [shape: f32[1,192], index: 2, kind: input, shape index: {}]
  %s3 = inlined_call_operand.vmem [shape: f32[128,192], index: 3, kind: output, shape index: {}]
  %s4 = sld [smem:[#allocation0]]
  $region22: #{tpu_custom_call.1} parent=0
    _
  %s6 = ssub.s32 1, %s4
  %s7 = scalar_select 0, %s6, %s4
  // Predicated region
  $region2: #{tpu_custom_call.1} parent=0 // pred_check
    _
  $region3: #{tpu_custom_call.1} parent=0 // pred_check_branch
    %9 = sbr.rel (0) target = $region5
  $region4: #{tpu_custom_call.1} parent=0 // pred_region
    _
  $region5: #{tpu_custom_call.1} parent=0 // pred_fallthru
    _
  // Predicated region
  $region6: #{tpu_custom_call.1} parent=0 // pred_check
    _
  $region7: #{tpu_custom_call.1} parent=0 // pred_check_branch
    %11 = sbr.rel (0) target = $region9
  $region8: #{tpu_custom_call.1} parent=0 // pred_region
    _
  $region9: #{tpu_custom_call.1} parent=0 // pred_fallthru
    _
  // Predicated region
  $region10: #{tpu_custom_call.1} parent=0 // pred_check
    _
  $region11: #{tpu_custom_call.1} parent=0 // pred_check_branch
    %13 = sbr.rel (0) target = $region13
  $region12: #{tpu_custom_call.1} parent=0 // pred_region
    _
  $region13: #{tpu_custom_call.1} parent=0 // pred_fallthru
    _
  %v14 = vld [vmem:[%s0] sm:$0xff]
  %v15 = vld [vmem:[%s0 + $0x8] sm:$0xff]
  %v16 = vld [vmem:[%s0 + $0x10] sm:$0xff]
  %v17 = vld [vmem:[%s0 + $0x18] sm:$0xff]
  %v18 = vld [vmem:[%s0 + $0x20] sm:$0xff]
  %v19 = vld [vmem:[%s0 + $0x28] sm:$0xff]
  %v20 = vld [vmem:[%s0 + $0x30] sm:$0xff]
  %v21 = vld [vmem:[%s0 + $0x38] sm:$0xff]
  %v22 = vld [vmem:[%s0 + $0x40] sm:$0xff]
  %v23 = vld [vmem:[%s0 + $0x48] sm:$0xff]
  %v24 = vld [vmem:[%s0 + $0x50] sm:$0xff]
  %v25 = vld [vmem:[%s0 + $0x58] sm:$0xff]
  %v26 = vld [vmem:[%s0 + $0x60] sm:$0xff]
  %v27 = vld [vmem:[%s0 + $0x68] sm:$0xff]
  %v28 = vld [vmem:[%s0 + $0x70] sm:$0xff]
  %v29 = vld [vmem:[%s0 + $0x78] sm:$0xff]
  %v30 = vld [vmem:[%s1] sm:$0xff]
  %v31 = vld [vmem:[%s1 + $0x8] sm:$0xff]
  %v32 = vld [vmem:[%s1 + $0x10] sm:$0xff]
  %v33 = vld [vmem:[%s1 + $0x18] sm:$0xff]
  %v34 = vld [vmem:[%s1 + $0x20] sm:$0xff]
  %v35 = vld [vmem:[%s1 + $0x28] sm:$0xff]
  %v36 = vld [vmem:[%s1 + $0x30] sm:$0xff]
  %v37 = vld [vmem:[%s1 + $0x38] sm:$0xff]
  %v38 = vld [vmem:[%s1 + $0x40] sm:$0xff]
  %v39 = vld [vmem:[%s1 + $0x48] sm:$0xff]
  %v40 = vld [vmem:[%s1 + $0x50] sm:$0xff]
  %v41 = vld [vmem:[%s1 + $0x58] sm:$0xff]
  %v42 = vld [vmem:[%s1 + $0x60] sm:$0xff]
  %v43 = vld [vmem:[%s1 + $0x68] sm:$0xff]
  %v44 = vld [vmem:[%s1 + $0x70] sm:$0xff]
  %v45 = vld [vmem:[%s1 + $0x78] sm:$0xff]
  %v46 = vld [vmem:[%s2] sm:$0x3]
  %v48 = vlaneseq
  %v49 = vshrl.u32 %v48, 7
  %v50 = vsub.s32 0, %v49
  %v51 = vrot.slane %v46, %v50
  %v52 = vlaneseq
  %v53 = vshrl.u32 %v52, 7
  %v54 = vsub.s32 1, %v53
  %v55 = vrot.slane %v46, %v54
  %vm58 = vcmask 523264
  %v60 = vsel %vm58, %v14, 0
  %v63 = vsel %vm58, %v15, 0
  %v66 = vsel %vm58, %v16, 0
  %v69 = vsel %vm58, %v17, 0
  %v72 = vsel %vm58, %v18, 0
  %v75 = vsel %vm58, %v19, 0
  %v78 = vsel %vm58, %v20, 0
  %v81 = vsel %vm58, %v21, 0
  %v84 = vsel %vm58, %v22, 0
  %v87 = vsel %vm58, %v23, 0
  %v90 = vsel %vm58, %v24, 0
  %v93 = vsel %vm58, %v25, 0
  %v96 = vsel %vm58, %v26, 0
  %v99 = vsel %vm58, %v27, 0
  %v102 = vsel %vm58, %v28, 0
  %v105 = vsel %vm58, %v29, 0
  %107 = vmatprep.subr.mxu0 0.0
  %108 = vmatpush1.msra.mxu0 0.0
  %109 = vmatprep.subr.mxu0 0.0
  %110 = vmatpush1.msra.mxu0 0.0
  %111 = vmatprep.subr.mxu0 0.0
  %112 = vmatpush1.msra.mxu0 0.0
  %113 = vmatprep.subr.mxu0 0.0
  %114 = vmatpush1.msra.mxu0 0.0
  %115 = vmatprep.subr.mxu0 0.0
  %116 = vmatpush1.msra.mxu0 0.0
  %117 = vmatprep.subr.mxu0 0.0
  %118 = vmatpush1.msra.mxu0 0.0
  %119 = vmatprep.subr.mxu0 0.0
  %120 = vmatpush1.msra.mxu0 0.0
  %121 = vmatprep.subr.mxu0 0.0
  %122 = vmatpush1.msra.mxu0 0.0
  %123 = vmatprep.subr.mxu0 %v45
  %124 = vmatpush1.msra.mxu0 %v44
  %125 = vmatprep.subr.mxu0 %v43
  %126 = vmatpush1.msra.mxu0 %v42
  %127 = vmatprep.subr.mxu0 %v41
  %128 = vmatpush1.msra.mxu0 %v40
  %129 = vmatprep.subr.mxu0 %v39
  %130 = vmatpush1.msra.mxu0 %v38
  %131 = vmatprep.subr.mxu0 %v37
  %132 = vmatpush1.msra.mxu0 %v36
  %133 = vmatprep.subr.mxu0 %v35
  %134 = vmatpush1.msra.mxu0 %v34
  %135 = vmatprep.subr.mxu0 %v33
  %136 = vmatpush1.msra.mxu0 %v32
  %137 = vmatprep.subr.mxu0 %v31
  %138 = vmatpush1.msra.mxu0 %v30
  %139 = vmatprep.subr.mxu0 0.0
  %140 = vmatpush2.msra.mxu0 0.0
  %141 = vmatprep.subr.mxu0 0.0
  %142 = vmatpush2.msra.mxu0 0.0
  %143 = vmatprep.subr.mxu0 0.0
  %144 = vmatpush2.msra.mxu0 0.0
  %145 = vmatprep.subr.mxu0 0.0
  %146 = vmatpush2.msra.mxu0 0.0
  %147 = vmatprep.subr.mxu0 0.0
  %148 = vmatpush2.msra.mxu0 0.0
  %149 = vmatprep.subr.mxu0 0.0
  %150 = vmatpush2.msra.mxu0 0.0
  %151 = vmatprep.subr.mxu0 0.0
  %152 = vmatpush2.msra.mxu0 0.0
  %153 = vmatprep.subr.mxu0 0.0
  %154 = vmatpush2.msra.mxu0 0.0
  %155 = vmatprep.subr.mxu0 0.0
  %156 = vmatpush2.msra.mxu0 0.0
  %157 = vmatprep.subr.mxu0 0.0
  %158 = vmatpush2.msra.mxu0 0.0
  %159 = vmatprep.subr.mxu0 0.0
  %160 = vmatpush2.msra.mxu0 0.0
  %161 = vmatprep.subr.mxu0 0.0
  %162 = vmatpush2.msra.mxu0 0.0
  %163 = vmatprep.subr.mxu0 0.0
  %164 = vmatpush2.msra.mxu0 0.0
  %165 = vmatprep.subr.mxu0 0.0
  %166 = vmatpush2.msra.mxu0 0.0
  %167 = vmatprep.subr.mxu0 0.0
  %168 = vmatpush2.msra.mxu0 0.0
  %169 = vmatprep.subr.mxu0 0.0
  %170 = vmatpush2.msra.mxu0 0.0
  %171 = vmatprep.mubr.f32.mxu0 0.0
  %172 = vmatmul.mubr.f32.gmra.mxu0 %v60
  %v173 = vpop.f32.mrf.mxu0
  %v174 = vadd.f32 %v51, %v173
  %v175 = vpop.f32.mrf.mxu0
  %v176 = vadd.f32 %v55, %v175
  %177 = vmatprep.mubr.f32.mxu0 0.0
  %178 = vmatmul.mubr.f32.gmra.mxu0 %v63
  %v179 = vpop.f32.mrf.mxu0
  %v180 = vadd.f32 %v51, %v179
  %v181 = vpop.f32.mrf.mxu0
  %v182 = vadd.f32 %v55, %v181
  %183 = vmatprep.mubr.f32.mxu0 0.0
  %184 = vmatmul.mubr.f32.gmra.mxu0 %v66
  %v185 = vpop.f32.mrf.mxu0
  %v186 = vadd.f32 %v51, %v185
  %v187 = vpop.f32.mrf.mxu0
  %v188 = vadd.f32 %v55, %v187
  %189 = vmatprep.mubr.f32.mxu0 0.0
  %190 = vmatmul.mubr.f32.gmra.mxu0 %v69
  %v191 = vpop.f32.mrf.mxu0
  %v192 = vadd.f32 %v51, %v191
  %v193 = vpop.f32.mrf.mxu0
  %v194 = vadd.f32 %v55, %v193
  %195 = vmatprep.mubr.f32.mxu0 0.0
  %196 = vmatmul.mubr.f32.gmra.mxu0 %v72
  %v197 = vpop.f32.mrf.mxu0
  %v198 = vadd.f32 %v51, %v197
  %v199 = vpop.f32.mrf.mxu0
  %v200 = vadd.f32 %v55, %v199
  %201 = vmatprep.mubr.f32.mxu0 0.0
  %202 = vmatmul.mubr.f32.gmra.mxu0 %v75
  %v203 = vpop.f32.mrf.mxu0
  %v204 = vadd.f32 %v51, %v203
  %v205 = vpop.f32.mrf.mxu0
  %v206 = vadd.f32 %v55, %v205
  %207 = vmatprep.mubr.f32.mxu0 0.0
  %208 = vmatmul.mubr.f32.gmra.mxu0 %v78
  %v209 = vpop.f32.mrf.mxu0
  %v210 = vadd.f32 %v51, %v209
  %v211 = vpop.f32.mrf.mxu0
  %v212 = vadd.f32 %v55, %v211
  %213 = vmatprep.mubr.f32.mxu0 0.0
  %214 = vmatmul.mubr.f32.gmra.mxu0 %v81
  %v215 = vpop.f32.mrf.mxu0
  %v216 = vadd.f32 %v51, %v215
  %v217 = vpop.f32.mrf.mxu0
  %v218 = vadd.f32 %v55, %v217
  %219 = vmatprep.mubr.f32.mxu0 0.0
  %220 = vmatmul.mubr.f32.gmra.mxu0 %v84
  %v221 = vpop.f32.mrf.mxu0
  %v222 = vadd.f32 %v51, %v221
  %v223 = vpop.f32.mrf.mxu0
  %v224 = vadd.f32 %v55, %v223
  %225 = vmatprep.mubr.f32.mxu0 0.0
  %226 = vmatmul.mubr.f32.gmra.mxu0 %v87
  %v227 = vpop.f32.mrf.mxu0
  %v228 = vadd.f32 %v51, %v227
  %v229 = vpop.f32.mrf.mxu0
  %v230 = vadd.f32 %v55, %v229
  %231 = vmatprep.mubr.f32.mxu0 0.0
  %232 = vmatmul.mubr.f32.gmra.mxu0 %v90
  %v233 = vpop.f32.mrf.mxu0
  %v234 = vadd.f32 %v51, %v233
  %v235 = vpop.f32.mrf.mxu0
  %v236 = vadd.f32 %v55, %v235
  %237 = vmatprep.mubr.f32.mxu0 0.0
  %238 = vmatmul.mubr.f32.gmra.mxu0 %v93
  %v239 = vpop.f32.mrf.mxu0
  %v240 = vadd.f32 %v51, %v239
  %v241 = vpop.f32.mrf.mxu0
  %v242 = vadd.f32 %v55, %v241
  %243 = vmatprep.mubr.f32.mxu0 0.0
  %244 = vmatmul.mubr.f32.gmra.mxu0 %v96
  %v245 = vpop.f32.mrf.mxu0
  %v246 = vadd.f32 %v51, %v245
  %v247 = vpop.f32.mrf.mxu0
  %v248 = vadd.f32 %v55, %v247
  %249 = vmatprep.mubr.f32.mxu0 0.0
  %250 = vmatmul.mubr.f32.gmra.mxu0 %v99
  %v251 = vpop.f32.mrf.mxu0
  %v252 = vadd.f32 %v51, %v251
  %v253 = vpop.f32.mrf.mxu0
  %v254 = vadd.f32 %v55, %v253
  %255 = vmatprep.mubr.f32.mxu0 0.0
  %256 = vmatmul.mubr.f32.gmra.mxu0 %v102
  %v257 = vpop.f32.mrf.mxu0
  %v258 = vadd.f32 %v51, %v257
  %v259 = vpop.f32.mrf.mxu0
  %v260 = vadd.f32 %v55, %v259
  %261 = vmatprep.mubr.f32.mxu0 0.0
  %262 = vmatmul.mubr.f32.gmra.mxu0 %v105
  %v263 = vpop.f32.mrf.mxu0
  %v264 = vadd.f32 %v51, %v263
  %v265 = vpop.f32.mrf.mxu0
  %v266 = vadd.f32 %v55, %v265
  %267 = vdwg.mxu0
  %268 = vst [vmem:[%s3] sm:$0xff] %v174
  %269 = vst.msk [vmem:[%s3 + $0x8] sm:$0xff] %vm58, %v176
  %270 = vst [vmem:[%s3 + $0x10] sm:$0xff] %v180
  %271 = vst.msk [vmem:[%s3 + $0x18] sm:$0xff] %vm58, %v182
  %272 = vst [vmem:[%s3 + $0x20] sm:$0xff] %v186
  %273 = vst.msk [vmem:[%s3 + $0x28] sm:$0xff] %vm58, %v188
  %274 = vst [vmem:[%s3 + $0x30] sm:$0xff] %v192
  %275 = vst.msk [vmem:[%s3 + $0x38] sm:$0xff] %vm58, %v194
  %276 = vst [vmem:[%s3 + $0x40] sm:$0xff] %v198
  %277 = vst.msk [vmem:[%s3 + $0x48] sm:$0xff] %vm58, %v200
  %278 = vst [vmem:[%s3 + $0x50] sm:$0xff] %v204
  %279 = vst.msk [vmem:[%s3 + $0x58] sm:$0xff] %vm58, %v206
  %280 = vst [vmem:[%s3 + $0x60] sm:$0xff] %v210
  %281 = vst.msk [vmem:[%s3 + $0x68] sm:$0xff] %vm58, %v212
  %282 = vst [vmem:[%s3 + $0x70] sm:$0xff] %v216
  %283 = vst.msk [vmem:[%s3 + $0x78] sm:$0xff] %vm58, %v218
  %284 = vst [vmem:[%s3 + $0x80] sm:$0xff] %v222
  %285 = vst.msk [vmem:[%s3 + $0x88] sm:$0xff] %vm58, %v224
  %286 = vst [vmem:[%s3 + $0x90] sm:$0xff] %v228
  %287 = vst.msk [vmem:[%s3 + $0x98] sm:$0xff] %vm58, %v230
  %288 = vst [vmem:[%s3 + $0xa0] sm:$0xff] %v234
  %289 = vst.msk [vmem:[%s3 + $0xa8] sm:$0xff] %vm58, %v236
  %290 = vst [vmem:[%s3 + $0xb0] sm:$0xff] %v240
  %291 = vst.msk [vmem:[%s3 + $0xb8] sm:$0xff] %vm58, %v242
  %292 = vst [vmem:[%s3 + $0xc0] sm:$0xff] %v246
  %293 = vst.msk [vmem:[%s3 + $0xc8] sm:$0xff] %vm58, %v248
  %294 = vst [vmem:[%s3 + $0xd0] sm:$0xff] %v252
  %295 = vst.msk [vmem:[%s3 + $0xd8] sm:$0xff] %vm58, %v254
  %296 = vst [vmem:[%s3 + $0xe0] sm:$0xff] %v258
  %297 = vst.msk [vmem:[%s3 + $0xe8] sm:$0xff] %vm58, %v260
  %298 = vst [vmem:[%s3 + $0xf0] sm:$0xff] %v264
  %299 = vst.msk [vmem:[%s3 + $0xf8] sm:$0xff] %vm58, %v266
  // Predicated region
  $region14: #{tpu_custom_call.1} parent=0 // pred_check
    _
  $region15: #{tpu_custom_call.1} parent=0 // pred_check_branch
    %301 = sbr.rel (0) target = $region17
  $region16: #{tpu_custom_call.1} parent=0 // pred_region
    _
  $region17: #{tpu_custom_call.1} parent=0 // pred_fallthru
    _
  // Predicated region
  $region18: #{tpu_custom_call.1} parent=0 // pred_check
    _
  $region19: #{tpu_custom_call.1} parent=0 // pred_check_branch
    %303 = sbr.rel (0) target = $region21
  $region20: #{tpu_custom_call.1} parent=0 // pred_region
    _
  $region21: #{tpu_custom_call.1} parent=0 // pred_fallthru
    _

</llo_original>
